<compile_context>
chip_gen: v7x
topology: tpu7x:2x2x1
jax: 0.10.0
libtpu: 0.0.40
codegen_flags: <defaults>
</compile_context>

<pallas_src>
import math
from functools import partial

import jax
import jax.numpy as jnp
from jax import lax
from jax.experimental import pallas as pl
from jax.experimental.pallas import tpu as pltpu

_LN_EPS = 1e-5          # torch.nn.LayerNorm default
_LANE = 128             # TPU lane width


# ---------------------------------------------------------------------------
# Kernel: whole DynamicPosBias forward in transposed (features x points) layout
# ---------------------------------------------------------------------------
def dpb_kernel(x_ref,      # (2,  Np)  biases^T, zero-padded to a lane multiple
               p_ref,      # (D,  Kp)  packed parameter slab (pack_dpb_params)
               out_ref):   # (N,  H)   final positional-bias table
    D = p_ref.shape[0]
    N, H = out_ref.shape

    x = x_ref[...]                       # (2, Np)
    p = p_ref[...]                       # (D, Kp)

    # --- pos_proj: Linear(2, D).  K = 2 -> two VPU broadcast-MACs. ----------
    wp = p[:, 0:2]                       # (D, 2)
    bp = p[:, 2:3]                       # (D, 1)
    h = wp[:, 0:1] * x[0:1, :] + wp[:, 1:2] * x[1:2, :] + bp        # (D, Np)

    # --- LN -> ReLU -> Linear(D, Dout); parameters start at slab column off -
    def ln_relu_linear(h, off):
        g = p[:, off:off + 1]                       # (D, 1) LayerNorm gamma
        be = p[:, off + 1:off + 2]                  # (D, 1) LayerNorm beta
        w = p[:, off + 2:off + 2 + D]               # (D, D) weight (rows = out)
        b = p[:, off + 2 + D:off + 3 + D]           # (D, 1) bias   (rows = out)
        mean = jnp.mean(h, axis=0, keepdims=True)   # sublane (XLU) reduction
        cen = h - mean
        var = jnp.mean(cen * cen, axis=0, keepdims=True)
        hn = cen * lax.rsqrt(var + _LN_EPS) * g + be      # rsqrt -> EUP
        hr = jnp.maximum(hn, 0.0)                         # ReLU
        acc = b + w[:, 0:1] * hr[0:1, :]            # unrolled VPU MACs (K<=8)
        for k in range(1, D):
            acc = acc + w[:, k:k + 1] * hr[k:k + 1, :]
        return acc                                  # (D, Np)

    stride = D + 3
    h = ln_relu_linear(h, 3)                        # pos1
    h = ln_relu_linear(h, 3 + stride)               # pos2
    h = ln_relu_linear(h, 3 + 2 * stride)           # pos3 (rows >= H are zero)

    # One tile-aligned (D, Np) -> (Np, D) XLU transpose, then drop padding.
    ht = jnp.transpose(h)                           # (Np, D)
    out_ref[...] = ht[:N, :H]                       # (N, H)


# ---------------------------------------------------------------------------
# One-time setup helpers (hoisted out of the per-call path)
# ---------------------------------------------------------------------------
def prepare_biases(biases):
    """(N, 2) -> lane-dense (2, Np) f32, Np = ceil(N/128)*128.  Static table."""
    n = biases.shape[0]
    np_ = ((n + _LANE - 1) // _LANE) * _LANE
    xt = jnp.transpose(jnp.asarray(biases, jnp.float32))          # (2, N)
    return jnp.pad(xt, ((0, 0), (0, np_ - n)))


def pack_dpb_params(wp, bp, g1, be1, w1, b1, g2, be2, w2, b2, g3, be3, w3, b3):
    """Pack every parameter into one (D, Kp) f32 slab (single DMA).

    Column layout:  [wp(2) | bp | g1 be1 w1(D) b1 | g2 be2 w2(D) b2 |
                     g3 be3 w3(D, row-padded) b3(row-padded) | zero pad].
    Requires num_heads <= D (true for dim=32, heads=4)."""
    D = wp.shape[0]
    H = w3.shape[0]
    assert wp.shape == (D, 2) and w1.shape == (D, D) and w2.shape == (D, D)
    assert w3.shape == (H, D) and H <= D

    f32 = lambda a: jnp.asarray(a, jnp.float32)

    def col(v):
        v = f32(v).reshape(-1, 1)
        return jnp.pad(v, ((0, D - v.shape[0]), (0, 0)))

    def mat(w):
        w = f32(w)
        return jnp.pad(w, ((0, D - w.shape[0]), (0, 0)))

    slab = jnp.concatenate([
        f32(wp), col(bp),
        col(g1), col(be1), f32(w1), col(b1),
        col(g2), col(be2), f32(w2), col(b2),
        col(g3), col(be3), mat(w3), col(b3),
    ], axis=1)                                       # (D, 3 + 3*(D+3))
    k = slab.shape[1]
    kp = ((k + _LANE - 1) // _LANE) * _LANE
    return jnp.pad(slab, ((0, 0), (0, kp - k)))      # (D, Kp)


# ---------------------------------------------------------------------------
# Forward: one launch, one kernel, two input DMAs
# ---------------------------------------------------------------------------
@partial(jax.jit, static_argnames=("n", "num_heads"))
def dpb_forward(xt, slab, *, n, num_heads):
    D, _ = slab.shape
    np_ = xt.shape[1]
    flops = np_ * (2 * 2 * D + 3 * (2 * D * D + 8 * D))
    bytes_accessed = 4 * (xt.size + slab.size + n * num_heads)
    vmem = pl.BlockSpec(memory_space=pltpu.MemorySpace.VMEM)
    return pl.pallas_call(
        dpb_kernel,
        out_shape=jax.ShapeDtypeStruct((n, num_heads), jnp.float32),
        in_specs=[vmem, vmem],
        out_specs=vmem,
        cost_estimate=pl.CostEstimate(flops=flops,
                                      transcendentals=3 * np_,
                                      bytes_accessed=bytes_accessed),
    )(xt, slab)


# ---------------------------------------------------------------------------
# Pure-JAX reference (mirrors the PyTorch module exactly)
# ---------------------------------------------------------------------------
def dynamic_pos_bias_ref(biases, wp, bp, g1, be1, w1, b1,
                         g2, be2, w2, b2, g3, be3, w3, b3):
    def ln(x, g, b):
        m = jnp.mean(x, axis=-1, keepdims=True)
        v = jnp.mean((x - m) ** 2, axis=-1, keepdims=True)
        return (x - m) / jnp.sqrt(v + _LN_EPS) * g + b

    h = biases @ wp.T + bp
    h = jnp.maximum(ln(h, g1, be1), 0.0) @ w1.T + b1
    h = jnp.maximum(ln(h, g2, be2), 0.0) @ w2.T + b2
    h = jnp.maximum(ln(h, g3, be3), 0.0) @ w3.T + b3
    return h


# ---------------------------------------------------------------------------
# Deterministic parameter init (PyTorch Linear default: U(-1/sqrt(fan_in), .))
# ---------------------------------------------------------------------------
def _linear_params(key, fan_in, fan_out):
    k1, k2 = jax.random.split(key)
    bound = 1.0 / math.sqrt(fan_in)
    w = jax.random.uniform(k1, (fan_out, fan_in), jnp.float32, -bound, bound)
    b = jax.random.uniform(k2, (fan_out,), jnp.float32, -bound, bound)
    return w, b


def _ln_params(key, d):
    k1, k2 = jax.random.split(key)
    g = jax.random.uniform(k1, (d,), jnp.float32, 0.5, 1.5)
    b = 0.1 * jax.random.normal(k2, (d,), jnp.float32)
    return g, b


if __name__ == "__main__":
    dim, num_heads = 32, 4          # pos_dim = dim // 4 = 8
    D = dim // 4
    G = 8                           # window size -> N = (2G-1)^2 = 225 rows
    N = (2 * G - 1) ** 2

    key = jax.random.PRNGKey(0)
    kb, kp, kl1, kl2, kl3, kn1, kn2, kn3 = jax.random.split(key, 8)

    # relative-position-style input coordinates (deterministic)
    biases = jax.random.uniform(kb, (N, 2), jnp.float32,
                                -float(G - 1), float(G - 1))

    wp, bp = _linear_params(kp, 2, D)            # pos_proj : Linear(2, D)
    w1, b1 = _linear_params(kl1, D, D)           # pos1     : Linear(D, D)
    w2, b2 = _linear_params(kl2, D, D)           # pos2     : Linear(D, D)
    w3, b3 = _linear_params(kl3, D, num_heads)   # pos3     : Linear(D, heads)
    g1, be1 = _ln_params(kn1, D)
    g2, be2 = _ln_params(kn2, D)
    g3, be3 = _ln_params(kn3, D)

    # One-time setup (hoisted out of the per-call path).
    xt = prepare_biases(biases)                                   # (2, 256)
    slab = pack_dpb_params(wp, bp, g1, be1, w1, b1,
                           g2, be2, w2, b2, g3, be3, w3, b3)      # (8, 128)

    out = dpb_forward(xt, slab, n=N, num_heads=num_heads)
    out = jax.block_until_ready(out)

    ref = dynamic_pos_bias_ref(biases, wp, bp, g1, be1, w1, b1,
                               g2, be2, w2, b2, g3, be3, w3, b3)

    assert out.shape == (N, num_heads), out.shape
    err = float(jnp.max(jnp.abs(out - ref)))
    assert jnp.allclose(out, ref, atol=1e-4, rtol=1e-3), err

    print("KERNEL_OK")
</pallas_src>

<mosaic_0001>
module attributes {stable_mosaic.version = 11 : i64} {
  func.func @dpb_kernel(%arg0: memref<2x256xf32, #tpu.memory_space<vmem>>, %arg1: memref<8x128xf32, #tpu.memory_space<vmem>>, %arg2: memref<225x4xf32, #tpu.memory_space<vmem>>) attributes {dimension_semantics = [], scalar_prefetch = 0 : i64, scratch_operands = 0 : i64, tpu.core_type = #tpu.core_type<tc>} {
    %c0 = arith.constant 0 : index
    %c0_0 = arith.constant 0 : index
    %0 = vector.load %arg0[%c0, %c0_0] : memref<2x256xf32, #tpu.memory_space<vmem>>, vector<2x256xf32>
    %c0_1 = arith.constant 0 : index
    %c0_2 = arith.constant 0 : index
    %1 = vector.load %arg1[%c0_1, %c0_2] : memref<8x128xf32, #tpu.memory_space<vmem>>, vector<8x128xf32>
    %2 = vector.extract_strided_slice %1 {offsets = [0, 0], sizes = [8, 2], strides = [1, 1]} : vector<8x128xf32> to vector<8x2xf32>
    %3 = vector.extract_strided_slice %1 {offsets = [0, 2], sizes = [8, 1], strides = [1, 1]} : vector<8x128xf32> to vector<8x1xf32>
    %4 = vector.extract_strided_slice %2 {offsets = [0, 0], sizes = [8, 1], strides = [1, 1]} : vector<8x2xf32> to vector<8x1xf32>
    %5 = vector.extract_strided_slice %0 {offsets = [0, 0], sizes = [1, 256], strides = [1, 1]} : vector<2x256xf32> to vector<1x256xf32>
    %6 = vector.broadcast %4 : vector<8x1xf32> to vector<8x256xf32>
    %7 = vector.broadcast %5 : vector<1x256xf32> to vector<8x256xf32>
    %8 = arith.mulf %6, %7 : vector<8x256xf32>
    %9 = vector.extract_strided_slice %2 {offsets = [0, 1], sizes = [8, 1], strides = [1, 1]} : vector<8x2xf32> to vector<8x1xf32>
    %10 = vector.extract_strided_slice %0 {offsets = [1, 0], sizes = [1, 256], strides = [1, 1]} : vector<2x256xf32> to vector<1x256xf32>
    %11 = vector.broadcast %9 : vector<8x1xf32> to vector<8x256xf32>
    %12 = vector.broadcast %10 : vector<1x256xf32> to vector<8x256xf32>
    %13 = arith.mulf %11, %12 : vector<8x256xf32>
    %14 = arith.addf %8, %13 : vector<8x256xf32>
    %15 = vector.broadcast %3 : vector<8x1xf32> to vector<8x256xf32>
    %16 = arith.addf %14, %15 : vector<8x256xf32>
    %17 = vector.extract_strided_slice %1 {offsets = [0, 3], sizes = [8, 1], strides = [1, 1]} : vector<8x128xf32> to vector<8x1xf32>
    %18 = vector.extract_strided_slice %1 {offsets = [0, 4], sizes = [8, 1], strides = [1, 1]} : vector<8x128xf32> to vector<8x1xf32>
    %19 = vector.extract_strided_slice %1 {offsets = [0, 5], sizes = [8, 8], strides = [1, 1]} : vector<8x128xf32> to vector<8x8xf32>
    %20 = vector.extract_strided_slice %1 {offsets = [0, 13], sizes = [8, 1], strides = [1, 1]} : vector<8x128xf32> to vector<8x1xf32>
    %cst = arith.constant dense<0.000000e+00> : vector<256xf32>
    %21 = vector.multi_reduction <add>, %16, %cst [0] : vector<8x256xf32> to vector<256xf32>
    %22 = vector.shape_cast %21 : vector<256xf32> to vector<1x256xf32>
    %cst_3 = arith.constant 8.000000e+00 : f32
    %23 = vector.broadcast %cst_3 : f32 to vector<1x256xf32>
    %24 = arith.divf %22, %23 : vector<1x256xf32>
    %25 = vector.broadcast %24 : vector<1x256xf32> to vector<8x256xf32>
    %26 = arith.subf %16, %25 : vector<8x256xf32>
    %27 = arith.mulf %26, %26 : vector<8x256xf32>
    %cst_4 = arith.constant dense<0.000000e+00> : vector<256xf32>
    %28 = vector.multi_reduction <add>, %27, %cst_4 [0] : vector<8x256xf32> to vector<256xf32>
    %29 = vector.shape_cast %28 : vector<256xf32> to vector<1x256xf32>
    %cst_5 = arith.constant 8.000000e+00 : f32
    %30 = vector.broadcast %cst_5 : f32 to vector<1x256xf32>
    %31 = arith.divf %29, %30 : vector<1x256xf32>
    %cst_6 = arith.constant 9.99999974E-6 : f32
    %32 = vector.broadcast %cst_6 : f32 to vector<1x256xf32>
    %33 = arith.addf %31, %32 : vector<1x256xf32>
    %34 = math.rsqrt %33 : vector<1x256xf32>
    %35 = vector.broadcast %34 : vector<1x256xf32> to vector<8x256xf32>
    %36 = arith.mulf %26, %35 : vector<8x256xf32>
    %37 = vector.broadcast %17 : vector<8x1xf32> to vector<8x256xf32>
    %38 = arith.mulf %36, %37 : vector<8x256xf32>
    %39 = vector.broadcast %18 : vector<8x1xf32> to vector<8x256xf32>
    %40 = arith.addf %38, %39 : vector<8x256xf32>
    %cst_7 = arith.constant 0.000000e+00 : f32
    %41 = vector.broadcast %cst_7 : f32 to vector<8x256xf32>
    %42 = arith.maximumf %40, %41 : vector<8x256xf32>
    %43 = vector.extract_strided_slice %19 {offsets = [0, 0], sizes = [8, 1], strides = [1, 1]} : vector<8x8xf32> to vector<8x1xf32>
    %44 = vector.extract_strided_slice %42 {offsets = [0, 0], sizes = [1, 256], strides = [1, 1]} : vector<8x256xf32> to vector<1x256xf32>
    %45 = vector.broadcast %43 : vector<8x1xf32> to vector<8x256xf32>
    %46 = vector.broadcast %44 : vector<1x256xf32> to vector<8x256xf32>
    %47 = arith.mulf %45, %46 : vector<8x256xf32>
    %48 = vector.broadcast %20 : vector<8x1xf32> to vector<8x256xf32>
    %49 = arith.addf %48, %47 : vector<8x256xf32>
    %50 = vector.extract_strided_slice %19 {offsets = [0, 1], sizes = [8, 1], strides = [1, 1]} : vector<8x8xf32> to vector<8x1xf32>
    %51 = vector.extract_strided_slice %42 {offsets = [1, 0], sizes = [1, 256], strides = [1, 1]} : vector<8x256xf32> to vector<1x256xf32>
    %52 = vector.broadcast %50 : vector<8x1xf32> to vector<8x256xf32>
    %53 = vector.broadcast %51 : vector<1x256xf32> to vector<8x256xf32>
    %54 = arith.mulf %52, %53 : vector<8x256xf32>
    %55 = arith.addf %49, %54 : vector<8x256xf32>
    %56 = vector.extract_strided_slice %19 {offsets = [0, 2], sizes = [8, 1], strides = [1, 1]} : vector<8x8xf32> to vector<8x1xf32>
    %57 = vector.extract_strided_slice %42 {offsets = [2, 0], sizes = [1, 256], strides = [1, 1]} : vector<8x256xf32> to vector<1x256xf32>
    %58 = vector.broadcast %56 : vector<8x1xf32> to vector<8x256xf32>
    %59 = vector.broadcast %57 : vector<1x256xf32> to vector<8x256xf32>
    %60 = arith.mulf %58, %59 : vector<8x256xf32>
    %61 = arith.addf %55, %60 : vector<8x256xf32>
    %62 = vector.extract_strided_slice %19 {offsets = [0, 3], sizes = [8, 1], strides = [1, 1]} : vector<8x8xf32> to vector<8x1xf32>
    %63 = vector.extract_strided_slice %42 {offsets = [3, 0], sizes = [1, 256], strides = [1, 1]} : vector<8x256xf32> to vector<1x256xf32>
    %64 = vector.broadcast %62 : vector<8x1xf32> to vector<8x256xf32>
    %65 = vector.broadcast %63 : vector<1x256xf32> to vector<8x256xf32>
    %66 = arith.mulf %64, %65 : vector<8x256xf32>
    %67 = arith.addf %61, %66 : vector<8x256xf32>
    %68 = vector.extract_strided_slice %19 {offsets = [0, 4], sizes = [8, 1], strides = [1, 1]} : vector<8x8xf32> to vector<8x1xf32>
    %69 = vector.extract_strided_slice %42 {offsets = [4, 0], sizes = [1, 256], strides = [1, 1]} : vector<8x256xf32> to vector<1x256xf32>
    %70 = vector.broadcast %68 : vector<8x1xf32> to vector<8x256xf32>
    %71 = vector.broadcast %69 : vector<1x256xf32> to vector<8x256xf32>
    %72 = arith.mulf %70, %71 : vector<8x256xf32>
    %73 = arith.addf %67, %72 : vector<8x256xf32>
    %74 = vector.extract_strided_slice %19 {offsets = [0, 5], sizes = [8, 1], strides = [1, 1]} : vector<8x8xf32> to vector<8x1xf32>
    %75 = vector.extract_strided_slice %42 {offsets = [5, 0], sizes = [1, 256], strides = [1, 1]} : vector<8x256xf32> to vector<1x256xf32>
    %76 = vector.broadcast %74 : vector<8x1xf32> to vector<8x256xf32>
    %77 = vector.broadcast %75 : vector<1x256xf32> to vector<8x256xf32>
    %78 = arith.mulf %76, %77 : vector<8x256xf32>
    %79 = arith.addf %73, %78 : vector<8x256xf32>
    %80 = vector.extract_strided_slice %19 {offsets = [0, 6], sizes = [8, 1], strides = [1, 1]} : vector<8x8xf32> to vector<8x1xf32>
    %81 = vector.extract_strided_slice %42 {offsets = [6, 0], sizes = [1, 256], strides = [1, 1]} : vector<8x256xf32> to vector<1x256xf32>
    %82 = vector.broadcast %80 : vector<8x1xf32> to vector<8x256xf32>
    %83 = vector.broadcast %81 : vector<1x256xf32> to vector<8x256xf32>
    %84 = arith.mulf %82, %83 : vector<8x256xf32>
    %85 = arith.addf %79, %84 : vector<8x256xf32>
    %86 = vector.extract_strided_slice %19 {offsets = [0, 7], sizes = [8, 1], strides = [1, 1]} : vector<8x8xf32> to vector<8x1xf32>
    %87 = vector.extract_strided_slice %42 {offsets = [7, 0], sizes = [1, 256], strides = [1, 1]} : vector<8x256xf32> to vector<1x256xf32>
    %88 = vector.broadcast %86 : vector<8x1xf32> to vector<8x256xf32>
    %89 = vector.broadcast %87 : vector<1x256xf32> to vector<8x256xf32>
    %90 = arith.mulf %88, %89 : vector<8x256xf32>
    %91 = arith.addf %85, %90 : vector<8x256xf32>
    %92 = vector.extract_strided_slice %1 {offsets = [0, 14], sizes = [8, 1], strides = [1, 1]} : vector<8x128xf32> to vector<8x1xf32>
    %93 = vector.extract_strided_slice %1 {offsets = [0, 15], sizes = [8, 1], strides = [1, 1]} : vector<8x128xf32> to vector<8x1xf32>
    %94 = vector.extract_strided_slice %1 {offsets = [0, 16], sizes = [8, 8], strides = [1, 1]} : vector<8x128xf32> to vector<8x8xf32>
    %95 = vector.extract_strided_slice %1 {offsets = [0, 24], sizes = [8, 1], strides = [1, 1]} : vector<8x128xf32> to vector<8x1xf32>
    %cst_8 = arith.constant dense<0.000000e+00> : vector<256xf32>
    %96 = vector.multi_reduction <add>, %91, %cst_8 [0] : vector<8x256xf32> to vector<256xf32>
    %97 = vector.shape_cast %96 : vector<256xf32> to vector<1x256xf32>
    %cst_9 = arith.constant 8.000000e+00 : f32
    %98 = vector.broadcast %cst_9 : f32 to vector<1x256xf32>
    %99 = arith.divf %97, %98 : vector<1x256xf32>
    %100 = vector.broadcast %99 : vector<1x256xf32> to vector<8x256xf32>
    %101 = arith.subf %91, %100 : vector<8x256xf32>
    %102 = arith.mulf %101, %101 : vector<8x256xf32>
    %cst_10 = arith.constant dense<0.000000e+00> : vector<256xf32>
    %103 = vector.multi_reduction <add>, %102, %cst_10 [0] : vector<8x256xf32> to vector<256xf32>
    %104 = vector.shape_cast %103 : vector<256xf32> to vector<1x256xf32>
    %cst_11 = arith.constant 8.000000e+00 : f32
    %105 = vector.broadcast %cst_11 : f32 to vector<1x256xf32>
    %106 = arith.divf %104, %105 : vector<1x256xf32>
    %cst_12 = arith.constant 9.99999974E-6 : f32
    %107 = vector.broadcast %cst_12 : f32 to vector<1x256xf32>
    %108 = arith.addf %106, %107 : vector<1x256xf32>
    %109 = math.rsqrt %108 : vector<1x256xf32>
    %110 = vector.broadcast %109 : vector<1x256xf32> to vector<8x256xf32>
    %111 = arith.mulf %101, %110 : vector<8x256xf32>
    %112 = vector.broadcast %92 : vector<8x1xf32> to vector<8x256xf32>
    %113 = arith.mulf %111, %112 : vector<8x256xf32>
    %114 = vector.broadcast %93 : vector<8x1xf32> to vector<8x256xf32>
    %115 = arith.addf %113, %114 : vector<8x256xf32>
    %cst_13 = arith.constant 0.000000e+00 : f32
    %116 = vector.broadcast %cst_13 : f32 to vector<8x256xf32>
    %117 = arith.maximumf %115, %116 : vector<8x256xf32>
    %118 = vector.extract_strided_slice %94 {offsets = [0, 0], sizes = [8, 1], strides = [1, 1]} : vector<8x8xf32> to vector<8x1xf32>
    %119 = vector.extract_strided_slice %117 {offsets = [0, 0], sizes = [1, 256], strides = [1, 1]} : vector<8x256xf32> to vector<1x256xf32>
    %120 = vector.broadcast %118 : vector<8x1xf32> to vector<8x256xf32>
    %121 = vector.broadcast %119 : vector<1x256xf32> to vector<8x256xf32>
    %122 = arith.mulf %120, %121 : vector<8x256xf32>
    %123 = vector.broadcast %95 : vector<8x1xf32> to vector<8x256xf32>
    %124 = arith.addf %123, %122 : vector<8x256xf32>
    %125 = vector.extract_strided_slice %94 {offsets = [0, 1], sizes = [8, 1], strides = [1, 1]} : vector<8x8xf32> to vector<8x1xf32>
    %126 = vector.extract_strided_slice %117 {offsets = [1, 0], sizes = [1, 256], strides = [1, 1]} : vector<8x256xf32> to vector<1x256xf32>
    %127 = vector.broadcast %125 : vector<8x1xf32> to vector<8x256xf32>
    %128 = vector.broadcast %126 : vector<1x256xf32> to vector<8x256xf32>
    %129 = arith.mulf %127, %128 : vector<8x256xf32>
    %130 = arith.addf %124, %129 : vector<8x256xf32>
    %131 = vector.extract_strided_slice %94 {offsets = [0, 2], sizes = [8, 1], strides = [1, 1]} : vector<8x8xf32> to vector<8x1xf32>
    %132 = vector.extract_strided_slice %117 {offsets = [2, 0], sizes = [1, 256], strides = [1, 1]} : vector<8x256xf32> to vector<1x256xf32>
    %133 = vector.broadcast %131 : vector<8x1xf32> to vector<8x256xf32>
    %134 = vector.broadcast %132 : vector<1x256xf32> to vector<8x256xf32>
    %135 = arith.mulf %133, %134 : vector<8x256xf32>
    %136 = arith.addf %130, %135 : vector<8x256xf32>
    %137 = vector.extract_strided_slice %94 {offsets = [0, 3], sizes = [8, 1], strides = [1, 1]} : vector<8x8xf32> to vector<8x1xf32>
    %138 = vector.extract_strided_slice %117 {offsets = [3, 0], sizes = [1, 256], strides = [1, 1]} : vector<8x256xf32> to vector<1x256xf32>
    %139 = vector.broadcast %137 : vector<8x1xf32> to vector<8x256xf32>
    %140 = vector.broadcast %138 : vector<1x256xf32> to vector<8x256xf32>
    %141 = arith.mulf %139, %140 : vector<8x256xf32>
    %142 = arith.addf %136, %141 : vector<8x256xf32>
    %143 = vector.extract_strided_slice %94 {offsets = [0, 4], sizes = [8, 1], strides = [1, 1]} : vector<8x8xf32> to vector<8x1xf32>
    %144 = vector.extract_strided_slice %117 {offsets = [4, 0], sizes = [1, 256], strides = [1, 1]} : vector<8x256xf32> to vector<1x256xf32>
    %145 = vector.broadcast %143 : vector<8x1xf32> to vector<8x256xf32>
    %146 = vector.broadcast %144 : vector<1x256xf32> to vector<8x256xf32>
    %147 = arith.mulf %145, %146 : vector<8x256xf32>
    %148 = arith.addf %142, %147 : vector<8x256xf32>
    %149 = vector.extract_strided_slice %94 {offsets = [0, 5], sizes = [8, 1], strides = [1, 1]} : vector<8x8xf32> to vector<8x1xf32>
    %150 = vector.extract_strided_slice %117 {offsets = [5, 0], sizes = [1, 256], strides = [1, 1]} : vector<8x256xf32> to vector<1x256xf32>
    %151 = vector.broadcast %149 : vector<8x1xf32> to vector<8x256xf32>
    %152 = vector.broadcast %150 : vector<1x256xf32> to vector<8x256xf32>
    %153 = arith.mulf %151, %152 : vector<8x256xf32>
    %154 = arith.addf %148, %153 : vector<8x256xf32>
    %155 = vector.extract_strided_slice %94 {offsets = [0, 6], sizes = [8, 1], strides = [1, 1]} : vector<8x8xf32> to vector<8x1xf32>
    %156 = vector.extract_strided_slice %117 {offsets = [6, 0], sizes = [1, 256], strides = [1, 1]} : vector<8x256xf32> to vector<1x256xf32>
    %157 = vector.broadcast %155 : vector<8x1xf32> to vector<8x256xf32>
    %158 = vector.broadcast %156 : vector<1x256xf32> to vector<8x256xf32>
    %159 = arith.mulf %157, %158 : vector<8x256xf32>
    %160 = arith.addf %154, %159 : vector<8x256xf32>
    %161 = vector.extract_strided_slice %94 {offsets = [0, 7], sizes = [8, 1], strides = [1, 1]} : vector<8x8xf32> to vector<8x1xf32>
    %162 = vector.extract_strided_slice %117 {offsets = [7, 0], sizes = [1, 256], strides = [1, 1]} : vector<8x256xf32> to vector<1x256xf32>
    %163 = vector.broadcast %161 : vector<8x1xf32> to vector<8x256xf32>
    %164 = vector.broadcast %162 : vector<1x256xf32> to vector<8x256xf32>
    %165 = arith.mulf %163, %164 : vector<8x256xf32>
    %166 = arith.addf %160, %165 : vector<8x256xf32>
    %167 = vector.extract_strided_slice %1 {offsets = [0, 25], sizes = [8, 1], strides = [1, 1]} : vector<8x128xf32> to vector<8x1xf32>
    %168 = vector.extract_strided_slice %1 {offsets = [0, 26], sizes = [8, 1], strides = [1, 1]} : vector<8x128xf32> to vector<8x1xf32>
    %169 = vector.extract_strided_slice %1 {offsets = [0, 27], sizes = [8, 8], strides = [1, 1]} : vector<8x128xf32> to vector<8x8xf32>
    %170 = vector.extract_strided_slice %1 {offsets = [0, 35], sizes = [8, 1], strides = [1, 1]} : vector<8x128xf32> to vector<8x1xf32>
    %cst_14 = arith.constant dense<0.000000e+00> : vector<256xf32>
    %171 = vector.multi_reduction <add>, %166, %cst_14 [0] : vector<8x256xf32> to vector<256xf32>
    %172 = vector.shape_cast %171 : vector<256xf32> to vector<1x256xf32>
    %cst_15 = arith.constant 8.000000e+00 : f32
    %173 = vector.broadcast %cst_15 : f32 to vector<1x256xf32>
    %174 = arith.divf %172, %173 : vector<1x256xf32>
    %175 = vector.broadcast %174 : vector<1x256xf32> to vector<8x256xf32>
    %176 = arith.subf %166, %175 : vector<8x256xf32>
    %177 = arith.mulf %176, %176 : vector<8x256xf32>
    %cst_16 = arith.constant dense<0.000000e+00> : vector<256xf32>
    %178 = vector.multi_reduction <add>, %177, %cst_16 [0] : vector<8x256xf32> to vector<256xf32>
    %179 = vector.shape_cast %178 : vector<256xf32> to vector<1x256xf32>
    %cst_17 = arith.constant 8.000000e+00 : f32
    %180 = vector.broadcast %cst_17 : f32 to vector<1x256xf32>
    %181 = arith.divf %179, %180 : vector<1x256xf32>
    %cst_18 = arith.constant 9.99999974E-6 : f32
    %182 = vector.broadcast %cst_18 : f32 to vector<1x256xf32>
    %183 = arith.addf %181, %182 : vector<1x256xf32>
    %184 = math.rsqrt %183 : vector<1x256xf32>
    %185 = vector.broadcast %184 : vector<1x256xf32> to vector<8x256xf32>
    %186 = arith.mulf %176, %185 : vector<8x256xf32>
    %187 = vector.broadcast %167 : vector<8x1xf32> to vector<8x256xf32>
    %188 = arith.mulf %186, %187 : vector<8x256xf32>
    %189 = vector.broadcast %168 : vector<8x1xf32> to vector<8x256xf32>
    %190 = arith.addf %188, %189 : vector<8x256xf32>
    %cst_19 = arith.constant 0.000000e+00 : f32
    %191 = vector.broadcast %cst_19 : f32 to vector<8x256xf32>
    %192 = arith.maximumf %190, %191 : vector<8x256xf32>
    %193 = vector.extract_strided_slice %169 {offsets = [0, 0], sizes = [8, 1], strides = [1, 1]} : vector<8x8xf32> to vector<8x1xf32>
    %194 = vector.extract_strided_slice %192 {offsets = [0, 0], sizes = [1, 256], strides = [1, 1]} : vector<8x256xf32> to vector<1x256xf32>
    %195 = vector.broadcast %193 : vector<8x1xf32> to vector<8x256xf32>
    %196 = vector.broadcast %194 : vector<1x256xf32> to vector<8x256xf32>
    %197 = arith.mulf %195, %196 : vector<8x256xf32>
    %198 = vector.broadcast %170 : vector<8x1xf32> to vector<8x256xf32>
    %199 = arith.addf %198, %197 : vector<8x256xf32>
    %200 = vector.extract_strided_slice %169 {offsets = [0, 1], sizes = [8, 1], strides = [1, 1]} : vector<8x8xf32> to vector<8x1xf32>
    %201 = vector.extract_strided_slice %192 {offsets = [1, 0], sizes = [1, 256], strides = [1, 1]} : vector<8x256xf32> to vector<1x256xf32>
    %202 = vector.broadcast %200 : vector<8x1xf32> to vector<8x256xf32>
    %203 = vector.broadcast %201 : vector<1x256xf32> to vector<8x256xf32>
    %204 = arith.mulf %202, %203 : vector<8x256xf32>
    %205 = arith.addf %199, %204 : vector<8x256xf32>
    %206 = vector.extract_strided_slice %169 {offsets = [0, 2], sizes = [8, 1], strides = [1, 1]} : vector<8x8xf32> to vector<8x1xf32>
    %207 = vector.extract_strided_slice %192 {offsets = [2, 0], sizes = [1, 256], strides = [1, 1]} : vector<8x256xf32> to vector<1x256xf32>
    %208 = vector.broadcast %206 : vector<8x1xf32> to vector<8x256xf32>
    %209 = vector.broadcast %207 : vector<1x256xf32> to vector<8x256xf32>
    %210 = arith.mulf %208, %209 : vector<8x256xf32>
    %211 = arith.addf %205, %210 : vector<8x256xf32>
    %212 = vector.extract_strided_slice %169 {offsets = [0, 3], sizes = [8, 1], strides = [1, 1]} : vector<8x8xf32> to vector<8x1xf32>
    %213 = vector.extract_strided_slice %192 {offsets = [3, 0], sizes = [1, 256], strides = [1, 1]} : vector<8x256xf32> to vector<1x256xf32>
    %214 = vector.broadcast %212 : vector<8x1xf32> to vector<8x256xf32>
    %215 = vector.broadcast %213 : vector<1x256xf32> to vector<8x256xf32>
    %216 = arith.mulf %214, %215 : vector<8x256xf32>
    %217 = arith.addf %211, %216 : vector<8x256xf32>
    %218 = vector.extract_strided_slice %169 {offsets = [0, 4], sizes = [8, 1], strides = [1, 1]} : vector<8x8xf32> to vector<8x1xf32>
    %219 = vector.extract_strided_slice %192 {offsets = [4, 0], sizes = [1, 256], strides = [1, 1]} : vector<8x256xf32> to vector<1x256xf32>
    %220 = vector.broadcast %218 : vector<8x1xf32> to vector<8x256xf32>
    %221 = vector.broadcast %219 : vector<1x256xf32> to vector<8x256xf32>
    %222 = arith.mulf %220, %221 : vector<8x256xf32>
    %223 = arith.addf %217, %222 : vector<8x256xf32>
    %224 = vector.extract_strided_slice %169 {offsets = [0, 5], sizes = [8, 1], strides = [1, 1]} : vector<8x8xf32> to vector<8x1xf32>
    %225 = vector.extract_strided_slice %192 {offsets = [5, 0], sizes = [1, 256], strides = [1, 1]} : vector<8x256xf32> to vector<1x256xf32>
    %226 = vector.broadcast %224 : vector<8x1xf32> to vector<8x256xf32>
    %227 = vector.broadcast %225 : vector<1x256xf32> to vector<8x256xf32>
    %228 = arith.mulf %226, %227 : vector<8x256xf32>
    %229 = arith.addf %223, %228 : vector<8x256xf32>
    %230 = vector.extract_strided_slice %169 {offsets = [0, 6], sizes = [8, 1], strides = [1, 1]} : vector<8x8xf32> to vector<8x1xf32>
    %231 = vector.extract_strided_slice %192 {offsets = [6, 0], sizes = [1, 256], strides = [1, 1]} : vector<8x256xf32> to vector<1x256xf32>
    %232 = vector.broadcast %230 : vector<8x1xf32> to vector<8x256xf32>
    %233 = vector.broadcast %231 : vector<1x256xf32> to vector<8x256xf32>
    %234 = arith.mulf %232, %233 : vector<8x256xf32>
    %235 = arith.addf %229, %234 : vector<8x256xf32>
    %236 = vector.extract_strided_slice %169 {offsets = [0, 7], sizes = [8, 1], strides = [1, 1]} : vector<8x8xf32> to vector<8x1xf32>
    %237 = vector.extract_strided_slice %192 {offsets = [7, 0], sizes = [1, 256], strides = [1, 1]} : vector<8x256xf32> to vector<1x256xf32>
    %238 = vector.broadcast %236 : vector<8x1xf32> to vector<8x256xf32>
    %239 = vector.broadcast %237 : vector<1x256xf32> to vector<8x256xf32>
    %240 = arith.mulf %238, %239 : vector<8x256xf32>
    %241 = arith.addf %235, %240 : vector<8x256xf32>
    %242 = tpu.transpose %241, [1, 0] : vector<8x256xf32> -> vector<256x8xf32>
    %243 = vector.extract_strided_slice %242 {offsets = [0, 0], sizes = [225, 4], strides = [1, 1]} : vector<256x8xf32> to vector<225x4xf32>
    %c0_20 = arith.constant 0 : index
    %c0_21 = arith.constant 0 : index
    %244 = vector.load %arg2[%c0_20, %c0_21] : memref<225x4xf32, #tpu.memory_space<vmem>>, vector<225x4xf32>
    tpu.vector_store %arg2[%c0_20, %c0_21], %243 {strides = array<i32>} : memref<225x4xf32, #tpu.memory_space<vmem>>, vector<225x4xf32>,
    return
  }
}

</mosaic_0001>

<llo_original>
// kernel: dpb_forward.1
$region0: #{dpb_forward.1}
  #allocation0 [shape = 'u32[]', space=smem, size = 0x4, offset = 0x4, fixed_abs, tag = 'smem constant byte address 0x4 - core index']
  #allocation1 [shape = 'u32[144,128]{1,0:T(1,128)}', space=vmem, size = 0x12000, scoped, tag = 'internal scratch']
  %s0 = inlined_call_operand.hbm [shape: f32[2,256], index: 0, kind: input, shape index: {}]
  %s1 = inlined_call_operand.hbm [shape: f32[8,128], index: 1, kind: input, shape index: {}]
  %s2 = inlined_call_operand.vmem [shape: f32[225,4], index: 2, kind: output, shape index: {}]
  %s3 = sld [smem:[#allocation0]]
  $region26: #{dpb_forward.1} parent=0
    _
  %s5 = ssub.s32 1, %s3
  %s6 = scalar_select 0, %s5, %s3
  $region1: #{dpb_forward.1} parent=0
    #allocation2 [shape = 'u8[2048]{0}', space=vmem, size = 0x800, scoped, tag = 'input window, operand 0, single buffered']
    #allocation3 [shape = 's32[1]{0}', space=sflag, size = 0x4, scoped, tag = 'scoped memory for dpb_forward.1']
    #allocation4 [shape = 'u8[4096]{0}', space=vmem, size = 0x1000, scoped, tag = 'input window, operand 1, single buffered']
    #allocation5 [shape = 's32[1]{0}', space=sflag, size = 0x4, scoped, tag = 'scoped memory for dpb_forward.1']
    %7 = vsyncpa [#allocation3], 0
    %8 = vsyncpa [#allocation5], 0
    // Predicated region
    $region2: #{dpb_forward.1} parent=1 // pred_check
      _
    $region3: #{dpb_forward.1} parent=1 // pred_check_branch
      %10 = sbr.rel (0) target = $region5
    $region4: #{dpb_forward.1} parent=1 // pred_region
      %s12 = ssub.s32 64, 64
      %13 = vsyncadd [#allocation3], %s12
      %s15 = sshll.u32 [#allocation2], 4
      %s16 = int_to_ptr.vmem [resolvable:$true] %s15
      %18 = dma.hbm_to_vmem [thread:$0]  %s0, 64, %s16, [#allocation3]
    $region5: #{dpb_forward.1} parent=1 // pred_fallthru
      _
    // Predicated region
    $region6: #{dpb_forward.1} parent=1 // pred_check
      _
    $region7: #{dpb_forward.1} parent=1 // pred_check_branch
      %20 = sbr.rel (0) target = $region9
    $region8: #{dpb_forward.1} parent=1 // pred_region
      %s22 = ssub.s32 128, 128
      %23 = vsyncadd [#allocation5], %s22
      %s25 = sshll.u32 [#allocation4], 4
      %s26 = int_to_ptr.vmem [resolvable:$true] %s25
      %28 = dma.hbm_to_vmem [thread:$0]  %s1, 128, %s26, [#allocation5]
    $region9: #{dpb_forward.1} parent=1 // pred_fallthru
      _
    // Predicated region
    $region10: #{dpb_forward.1} parent=1 // pred_check
      _
    $region11: #{dpb_forward.1} parent=1 // pred_check_branch
      %30 = sbr.rel (0) target = $region13
    $region12: #{dpb_forward.1} parent=1 // pred_region
      %31 = dma.done [#allocation3], 64
    $region13: #{dpb_forward.1} parent=1 // pred_fallthru
      _
    // Predicated region
    $region14: #{dpb_forward.1} parent=1 // pred_check
      _
    $region15: #{dpb_forward.1} parent=1 // pred_check_branch
      %33 = sbr.rel (0) target = $region17
    $region16: #{dpb_forward.1} parent=1 // pred_region
      %34 = dma.done [#allocation5], 128
    $region17: #{dpb_forward.1} parent=1 // pred_fallthru
      _
    %v35 = vld [vmem:[#allocation2] sm:$0xf]
    %v36 = vld [vmem:[#allocation4] sm:$0xff]
    %38 = vset.pattern.permute.xlu0 0
    %39 = vperm.xlu0 %38, %v36
    %v40 = vpop.permute.xlu0 %39
    %v43 = vlaneseq
    %v44 = vshrl.u32 %v43, 7
    %v45 = vsub.s32 0, %v44
    %v46 = vrot.slane %v35, %v45
    %v47 = vlaneseq
    %v48 = vshrl.u32 %v47, 7
    %v49 = vsub.s32 2, %v48
    %v50 = vrot.slane %v35, %v49
    %v53 = vlaneseq
    %v54 = vshrl.u32 %v53, 7
    %v55 = vsub.s32 0, %v54
    %v56 = vrot.slane %v46, %v55
    %v57 = vlaneseq
    %v58 = vshrl.u32 %v57, 7
    %v59 = vsub.s32 0, %v58
    %v60 = vrot.slane %v50, %v59
    %v61 = vmul.f32 %v40, %v56
    %v62 = vmul.f32 %v40, %v60
    %63 = vset.pattern.permute.xlu0 1
    %64 = vperm.xlu0 %63, %v36
    %v65 = vpop.permute.xlu0 %64
    %v67 = vlaneseq
    %v68 = vshrl.u32 %v67, 7
    %v69 = vsub.s32 1, %v68
    %v70 = vrot.slane %v35, %v69
    %v71 = vlaneseq
    %v72 = vshrl.u32 %v71, 7
    %v73 = vsub.s32 3, %v72
    %v74 = vrot.slane %v35, %v73
    %v77 = vlaneseq
    %v78 = vshrl.u32 %v77, 7
    %v79 = vsub.s32 1, %v78
    %v80 = vrot.slane %v70, %v79
    %v81 = vlaneseq
    %v82 = vshrl.u32 %v81, 7
    %v83 = vsub.s32 1, %v82
    %v84 = vrot.slane %v74, %v83
    %v85 = vmul.f32 %v65, %v80
    %v86 = vmul.f32 %v65, %v84
    %v87 = vadd.f32 %v61, %v85
    %v88 = vadd.f32 %v62, %v86
    %89 = vset.pattern.permute.xlu0 2
    %90 = vperm.xlu0 %89, %v36
    %v91 = vpop.permute.xlu0 %90
    %v93 = vadd.f32 %v87, %v91
    %v94 = vadd.f32 %v88, %v91
    %v95 = vrot.slane %v93, 4
    %v96 = vadd.f32 %v93, %v95
    %v97 = vrot.slane %v96, 2
    %v98 = vadd.f32 %v96, %v97
    %v99 = vrot.slane %v98, 1
    %v100 = vadd.f32 %v98, %v99
    %v101 = vrot.slane %v94, 4
    %v102 = vadd.f32 %v94, %v101
    %v103 = vrot.slane %v102, 2
    %v104 = vadd.f32 %v102, %v103
    %v105 = vrot.slane %v104, 1
    %v106 = vadd.f32 %v104, %v105
    %v107 = vrcp.pop 8.0
    %v108 = vmul.f32 %v100, %v107
    %v109 = vmul.f32 %v106, %v107
    %v110 = vsub.f32 %v93, %v108
    %v111 = vsub.f32 %v94, %v109
    %v112 = vmul.f32 %v110, %v110
    %v113 = vmul.f32 %v111, %v111
    %v114 = vrot.slane %v112, 4
    %v115 = vadd.f32 %v112, %v114
    %v116 = vrot.slane %v115, 2
    %v117 = vadd.f32 %v115, %v116
    %v118 = vrot.slane %v117, 1
    %v119 = vadd.f32 %v117, %v118
    %v120 = vrot.slane %v113, 4
    %v121 = vadd.f32 %v113, %v120
    %v122 = vrot.slane %v121, 2
    %v123 = vadd.f32 %v121, %v122
    %v124 = vrot.slane %v123, 1
    %v125 = vadd.f32 %v123, %v124
    %v126 = vmul.f32 %v119, %v107
    %v127 = vmul.f32 %v125, %v107
    %v128 = vadd.f32 %v126, 1e-05
    %v129 = vadd.f32 %v127, 1e-05
    %v130 = vrsqrt.pop %v128
    %v131 = vrsqrt.pop %v129
    %v132 = vmul.f32 %v110, %v130
    %v133 = vmul.f32 %v111, %v131
    %134 = vset.pattern.permute.xlu0 3
    %135 = vperm.xlu0 %134, %v36
    %v136 = vpop.permute.xlu0 %135
    %v138 = vmul.f32 %v132, %v136
    %v139 = vmul.f32 %v133, %v136
    %140 = vset.pattern.permute.xlu0 4
    %141 = vperm.xlu0 %140, %v36
    %v142 = vpop.permute.xlu0 %141
    %v144 = vadd.f32 %v138, %v142
    %v145 = vadd.f32 %v139, %v142
    %v146 = vmax.f32 %v144, 0.0
    %v147 = vmax.f32 %v145, 0.0
    %148 = vset.pattern.permute.xlu0 5
    %149 = vperm.xlu0 %148, %v36
    %v150 = vpop.permute.xlu0 %149
    %v152 = vlaneseq
    %v153 = vshrl.u32 %v152, 7
    %v154 = vsub.s32 0, %v153
    %v155 = vrot.slane %v146, %v154
    %v156 = vlaneseq
    %v157 = vshrl.u32 %v156, 7
    %v158 = vsub.s32 0, %v157
    %v159 = vrot.slane %v147, %v158
    %v160 = vmul.f32 %v150, %v155
    %v161 = vmul.f32 %v150, %v159
    %162 = vset.pattern.permute.xlu0 13
    %163 = vperm.xlu0 %162, %v36
    %v164 = vpop.permute.xlu0 %163
    %v166 = vadd.f32 %v164, %v160
    %v167 = vadd.f32 %v164, %v161
    %168 = vset.pattern.permute.xlu0 6
    %169 = vperm.xlu0 %168, %v36
    %v170 = vpop.permute.xlu0 %169
    %v172 = vlaneseq
    %v173 = vshrl.u32 %v172, 7
    %v174 = vsub.s32 1, %v173
    %v175 = vrot.slane %v146, %v174
    %v176 = vlaneseq
    %v177 = vshrl.u32 %v176, 7
    %v178 = vsub.s32 1, %v177
    %v179 = vrot.slane %v147, %v178
    %v180 = vmul.f32 %v170, %v175
    %v181 = vmul.f32 %v170, %v179
    %v182 = vadd.f32 %v166, %v180
    %v183 = vadd.f32 %v167, %v181
    %184 = vset.pattern.permute.xlu0 7
    %185 = vperm.xlu0 %184, %v36
    %v186 = vpop.permute.xlu0 %185
    %v188 = vlaneseq
    %v189 = vshrl.u32 %v188, 7
    %v190 = vsub.s32 2, %v189
    %v191 = vrot.slane %v146, %v190
    %v192 = vlaneseq
    %v193 = vshrl.u32 %v192, 7
    %v194 = vsub.s32 2, %v193
    %v195 = vrot.slane %v147, %v194
    %v196 = vmul.f32 %v186, %v191
    %v197 = vmul.f32 %v186, %v195
    %v198 = vadd.f32 %v182, %v196
    %v199 = vadd.f32 %v183, %v197
    %200 = vset.pattern.permute.xlu0 8
    %201 = vperm.xlu0 %200, %v36
    %v202 = vpop.permute.xlu0 %201
    %v204 = vlaneseq
    %v205 = vshrl.u32 %v204, 7
    %v206 = vsub.s32 3, %v205
    %v207 = vrot.slane %v146, %v206
    %v208 = vlaneseq
    %v209 = vshrl.u32 %v208, 7
    %v210 = vsub.s32 3, %v209
    %v211 = vrot.slane %v147, %v210
    %v212 = vmul.f32 %v202, %v207
    %v213 = vmul.f32 %v202, %v211
    %v214 = vadd.f32 %v198, %v212
    %v215 = vadd.f32 %v199, %v213
    %216 = vset.pattern.permute.xlu0 9
    %217 = vperm.xlu0 %216, %v36
    %v218 = vpop.permute.xlu0 %217
    %v220 = vlaneseq
    %v221 = vshrl.u32 %v220, 7
    %v222 = vsub.s32 4, %v221
    %v223 = vrot.slane %v146, %v222
    %v224 = vlaneseq
    %v225 = vshrl.u32 %v224, 7
    %v226 = vsub.s32 4, %v225
    %v227 = vrot.slane %v147, %v226
    %v228 = vmul.f32 %v218, %v223
    %v229 = vmul.f32 %v218, %v227
    %v230 = vadd.f32 %v214, %v228
    %v231 = vadd.f32 %v215, %v229
    %232 = vset.pattern.permute.xlu0 10
    %233 = vperm.xlu0 %232, %v36
    %v234 = vpop.permute.xlu0 %233
    %v236 = vlaneseq
    %v237 = vshrl.u32 %v236, 7
    %v238 = vsub.s32 5, %v237
    %v239 = vrot.slane %v146, %v238
    %v240 = vlaneseq
    %v241 = vshrl.u32 %v240, 7
    %v242 = vsub.s32 5, %v241
    %v243 = vrot.slane %v147, %v242
    %v244 = vmul.f32 %v234, %v239
    %v245 = vmul.f32 %v234, %v243
    %v246 = vadd.f32 %v230, %v244
    %v247 = vadd.f32 %v231, %v245
    %248 = vset.pattern.permute.xlu0 11
    %249 = vperm.xlu0 %248, %v36
    %v250 = vpop.permute.xlu0 %249
    %v252 = vlaneseq
    %v253 = vshrl.u32 %v252, 7
    %v254 = vsub.s32 6, %v253
    %v255 = vrot.slane %v146, %v254
    %v256 = vlaneseq
    %v257 = vshrl.u32 %v256, 7
    %v258 = vsub.s32 6, %v257
    %v259 = vrot.slane %v147, %v258
    %v260 = vmul.f32 %v250, %v255
    %v261 = vmul.f32 %v250, %v259
    %v262 = vadd.f32 %v246, %v260
    %v263 = vadd.f32 %v247, %v261
    %264 = vset.pattern.permute.xlu0 12
    %265 = vperm.xlu0 %264, %v36
    %v266 = vpop.permute.xlu0 %265
    %v268 = vlaneseq
    %v269 = vshrl.u32 %v268, 7
    %v270 = vsub.s32 7, %v269
    %v271 = vrot.slane %v146, %v270
    %v272 = vlaneseq
    %v273 = vshrl.u32 %v272, 7
    %v274 = vsub.s32 7, %v273
    %v275 = vrot.slane %v147, %v274
    %v276 = vmul.f32 %v266, %v271
    %v277 = vmul.f32 %v266, %v275
    %v278 = vadd.f32 %v262, %v276
    %v279 = vadd.f32 %v263, %v277
    %v280 = vrot.slane %v278, 4
    %v281 = vadd.f32 %v278, %v280
    %v282 = vrot.slane %v281, 2
    %v283 = vadd.f32 %v281, %v282
    %v284 = vrot.slane %v283, 1
    %v285 = vadd.f32 %v283, %v284
    %v286 = vrot.slane %v279, 4
    %v287 = vadd.f32 %v279, %v286
    %v288 = vrot.slane %v287, 2
    %v289 = vadd.f32 %v287, %v288
    %v290 = vrot.slane %v289, 1
    %v291 = vadd.f32 %v289, %v290
    %v292 = vmul.f32 %v285, %v107
    %v293 = vmul.f32 %v291, %v107
    %v294 = vsub.f32 %v278, %v292
    %v295 = vsub.f32 %v279, %v293
    %v296 = vmul.f32 %v294, %v294
    %v297 = vmul.f32 %v295, %v295
    %v298 = vrot.slane %v296, 4
    %v299 = vadd.f32 %v296, %v298
    %v300 = vrot.slane %v299, 2
    %v301 = vadd.f32 %v299, %v300
    %v302 = vrot.slane %v301, 1
    %v303 = vadd.f32 %v301, %v302
    %v304 = vrot.slane %v297, 4
    %v305 = vadd.f32 %v297, %v304
    %v306 = vrot.slane %v305, 2
    %v307 = vadd.f32 %v305, %v306
    %v308 = vrot.slane %v307, 1
    %v309 = vadd.f32 %v307, %v308
    %v310 = vmul.f32 %v303, %v107
    %v311 = vmul.f32 %v309, %v107
    %v312 = vadd.f32 %v310, 1e-05
    %v313 = vadd.f32 %v311, 1e-05
    %v314 = vrsqrt.pop %v312
    %v315 = vrsqrt.pop %v313
    %v316 = vmul.f32 %v294, %v314
    %v317 = vmul.f32 %v295, %v315
    %318 = vset.pattern.permute.xlu0 14
    %319 = vperm.xlu0 %318, %v36
    %v320 = vpop.permute.xlu0 %319
    %v322 = vmul.f32 %v316, %v320
    %v323 = vmul.f32 %v317, %v320
    %324 = vset.pattern.permute.xlu0 15
    %325 = vperm.xlu0 %324, %v36
    %v326 = vpop.permute.xlu0 %325
    %v328 = vadd.f32 %v322, %v326
    %v329 = vadd.f32 %v323, %v326
    %v330 = vmax.f32 %v328, 0.0
    %v331 = vmax.f32 %v329, 0.0
    %332 = vset.pattern.permute.xlu0 16
    %333 = vperm.xlu0 %332, %v36
    %v334 = vpop.permute.xlu0 %333
    %v336 = vlaneseq
    %v337 = vshrl.u32 %v336, 7
    %v338 = vsub.s32 0, %v337
    %v339 = vrot.slane %v330, %v338
    %v340 = vlaneseq
    %v341 = vshrl.u32 %v340, 7
    %v342 = vsub.s32 0, %v341
    %v343 = vrot.slane %v331, %v342
    %v344 = vmul.f32 %v334, %v339
    %v345 = vmul.f32 %v334, %v343
    %346 = vset.pattern.permute.xlu0 24
    %347 = vperm.xlu0 %346, %v36
    %v348 = vpop.permute.xlu0 %347
    %v350 = vadd.f32 %v348, %v344
    %v351 = vadd.f32 %v348, %v345
    %352 = vset.pattern.permute.xlu0 17
    %353 = vperm.xlu0 %352, %v36
    %v354 = vpop.permute.xlu0 %353
    %v356 = vlaneseq
    %v357 = vshrl.u32 %v356, 7
    %v358 = vsub.s32 1, %v357
    %v359 = vrot.slane %v330, %v358
    %v360 = vlaneseq
    %v361 = vshrl.u32 %v360, 7
    %v362 = vsub.s32 1, %v361
    %v363 = vrot.slane %v331, %v362
    %v364 = vmul.f32 %v354, %v359
    %v365 = vmul.f32 %v354, %v363
    %v366 = vadd.f32 %v350, %v364
    %v367 = vadd.f32 %v351, %v365
    %368 = vset.pattern.permute.xlu0 18
    %369 = vperm.xlu0 %368, %v36
    %v370 = vpop.permute.xlu0 %369
    %v372 = vlaneseq
    %v373 = vshrl.u32 %v372, 7
    %v374 = vsub.s32 2, %v373
    %v375 = vrot.slane %v330, %v374
    %v376 = vlaneseq
    %v377 = vshrl.u32 %v376, 7
    %v378 = vsub.s32 2, %v377
    %v379 = vrot.slane %v331, %v378
    %v380 = vmul.f32 %v370, %v375
    %v381 = vmul.f32 %v370, %v379
    %v382 = vadd.f32 %v366, %v380
    %v383 = vadd.f32 %v367, %v381
    %384 = vset.pattern.permute.xlu0 19
    %385 = vperm.xlu0 %384, %v36
    %v386 = vpop.permute.xlu0 %385
    %v388 = vlaneseq
    %v389 = vshrl.u32 %v388, 7
    %v390 = vsub.s32 3, %v389
    %v391 = vrot.slane %v330, %v390
    %v392 = vlaneseq
    %v393 = vshrl.u32 %v392, 7
    %v394 = vsub.s32 3, %v393
    %v395 = vrot.slane %v331, %v394
    %v396 = vmul.f32 %v386, %v391
    %v397 = vmul.f32 %v386, %v395
    %v398 = vadd.f32 %v382, %v396
    %v399 = vadd.f32 %v383, %v397
    %400 = vset.pattern.permute.xlu0 20
    %401 = vperm.xlu0 %400, %v36
    %v402 = vpop.permute.xlu0 %401
    %v404 = vlaneseq
    %v405 = vshrl.u32 %v404, 7
    %v406 = vsub.s32 4, %v405
    %v407 = vrot.slane %v330, %v406
    %v408 = vlaneseq
    %v409 = vshrl.u32 %v408, 7
    %v410 = vsub.s32 4, %v409
    %v411 = vrot.slane %v331, %v410
    %v412 = vmul.f32 %v402, %v407
    %v413 = vmul.f32 %v402, %v411
    %v414 = vadd.f32 %v398, %v412
    %v415 = vadd.f32 %v399, %v413
    %416 = vset.pattern.permute.xlu0 21
    %417 = vperm.xlu0 %416, %v36
    %v418 = vpop.permute.xlu0 %417
    %v420 = vlaneseq
    %v421 = vshrl.u32 %v420, 7
    %v422 = vsub.s32 5, %v421
    %v423 = vrot.slane %v330, %v422
    %v424 = vlaneseq
    %v425 = vshrl.u32 %v424, 7
    %v426 = vsub.s32 5, %v425
    %v427 = vrot.slane %v331, %v426
    %v428 = vmul.f32 %v418, %v423
    %v429 = vmul.f32 %v418, %v427
    %v430 = vadd.f32 %v414, %v428
    %v431 = vadd.f32 %v415, %v429
    %432 = vset.pattern.permute.xlu0 22
    %433 = vperm.xlu0 %432, %v36
    %v434 = vpop.permute.xlu0 %433
    %v436 = vlaneseq
    %v437 = vshrl.u32 %v436, 7
    %v438 = vsub.s32 6, %v437
    %v439 = vrot.slane %v330, %v438
    %v440 = vlaneseq
    %v441 = vshrl.u32 %v440, 7
    %v442 = vsub.s32 6, %v441
    %v443 = vrot.slane %v331, %v442
    %v444 = vmul.f32 %v434, %v439
    %v445 = vmul.f32 %v434, %v443
    %v446 = vadd.f32 %v430, %v444
    %v447 = vadd.f32 %v431, %v445
    %448 = vset.pattern.permute.xlu0 23
    %449 = vperm.xlu0 %448, %v36
    %v450 = vpop.permute.xlu0 %449
    %v452 = vlaneseq
    %v453 = vshrl.u32 %v452, 7
    %v454 = vsub.s32 7, %v453
    %v455 = vrot.slane %v330, %v454
    %v456 = vlaneseq
    %v457 = vshrl.u32 %v456, 7
    %v458 = vsub.s32 7, %v457
    %v459 = vrot.slane %v331, %v458
    %v460 = vmul.f32 %v450, %v455
    %v461 = vmul.f32 %v450, %v459
    %v462 = vadd.f32 %v446, %v460
    %v463 = vadd.f32 %v447, %v461
    %v464 = vrot.slane %v462, 4
    %v465 = vadd.f32 %v462, %v464
    %v466 = vrot.slane %v465, 2
    %v467 = vadd.f32 %v465, %v466
    %v468 = vrot.slane %v467, 1
    %v469 = vadd.f32 %v467, %v468
    %v470 = vrot.slane %v463, 4
    %v471 = vadd.f32 %v463, %v470
    %v472 = vrot.slane %v471, 2
    %v473 = vadd.f32 %v471, %v472
    %v474 = vrot.slane %v473, 1
    %v475 = vadd.f32 %v473, %v474
    %v476 = vmul.f32 %v469, %v107
    %v477 = vmul.f32 %v475, %v107
    %v478 = vsub.f32 %v462, %v476
    %v479 = vsub.f32 %v463, %v477
    %v480 = vmul.f32 %v478, %v478
    %v481 = vmul.f32 %v479, %v479
    %v482 = vrot.slane %v480, 4
    %v483 = vadd.f32 %v480, %v482
    %v484 = vrot.slane %v483, 2
    %v485 = vadd.f32 %v483, %v484
    %v486 = vrot.slane %v485, 1
    %v487 = vadd.f32 %v485, %v486
    %v488 = vrot.slane %v481, 4
    %v489 = vadd.f32 %v481, %v488
    %v490 = vrot.slane %v489, 2
    %v491 = vadd.f32 %v489, %v490
    %v492 = vrot.slane %v491, 1
    %v493 = vadd.f32 %v491, %v492
    %v494 = vmul.f32 %v487, %v107
    %v495 = vmul.f32 %v493, %v107
    %v496 = vadd.f32 %v494, 1e-05
    %v497 = vadd.f32 %v495, 1e-05
    %v498 = vrsqrt.pop %v496
    %v499 = vrsqrt.pop %v497
    %v500 = vmul.f32 %v478, %v498
    %v501 = vmul.f32 %v479, %v499
    %502 = vset.pattern.permute.xlu0 25
    %503 = vperm.xlu0 %502, %v36
    %v504 = vpop.permute.xlu0 %503
    %v506 = vmul.f32 %v500, %v504
    %v507 = vmul.f32 %v501, %v504
    %508 = vset.pattern.permute.xlu0 26
    %509 = vperm.xlu0 %508, %v36
    %v510 = vpop.permute.xlu0 %509
    %v512 = vadd.f32 %v506, %v510
    %v513 = vadd.f32 %v507, %v510
    %v514 = vmax.f32 %v512, 0.0
    %v515 = vmax.f32 %v513, 0.0
    %516 = vset.pattern.permute.xlu0 27
    %517 = vperm.xlu0 %516, %v36
    %v518 = vpop.permute.xlu0 %517
    %v520 = vlaneseq
    %v521 = vshrl.u32 %v520, 7
    %v522 = vsub.s32 0, %v521
    %v523 = vrot.slane %v514, %v522
    %v524 = vlaneseq
    %v525 = vshrl.u32 %v524, 7
    %v526 = vsub.s32 0, %v525
    %v527 = vrot.slane %v515, %v526
    %v528 = vmul.f32 %v518, %v523
    %v529 = vmul.f32 %v518, %v527
    %530 = vset.pattern.permute.xlu0 35
    %531 = vperm.xlu0 %530, %v36
    %v532 = vpop.permute.xlu0 %531
    %v534 = vadd.f32 %v532, %v528
    %v535 = vadd.f32 %v532, %v529
    %536 = vset.pattern.permute.xlu0 28
    %537 = vperm.xlu0 %536, %v36
    %v538 = vpop.permute.xlu0 %537
    %v540 = vlaneseq
    %v541 = vshrl.u32 %v540, 7
    %v542 = vsub.s32 1, %v541
    %v543 = vrot.slane %v514, %v542
    %v544 = vlaneseq
    %v545 = vshrl.u32 %v544, 7
    %v546 = vsub.s32 1, %v545
    %v547 = vrot.slane %v515, %v546
    %v548 = vmul.f32 %v538, %v543
    %v549 = vmul.f32 %v538, %v547
    %v550 = vadd.f32 %v534, %v548
    %v551 = vadd.f32 %v535, %v549
    %552 = vset.pattern.permute.xlu0 29
    %553 = vperm.xlu0 %552, %v36
    %v554 = vpop.permute.xlu0 %553
    %v556 = vlaneseq
    %v557 = vshrl.u32 %v556, 7
    %v558 = vsub.s32 2, %v557
    %v559 = vrot.slane %v514, %v558
    %v560 = vlaneseq
    %v561 = vshrl.u32 %v560, 7
    %v562 = vsub.s32 2, %v561
    %v563 = vrot.slane %v515, %v562
    %v564 = vmul.f32 %v554, %v559
    %v565 = vmul.f32 %v554, %v563
    %v566 = vadd.f32 %v550, %v564
    %v567 = vadd.f32 %v551, %v565
    %568 = vset.pattern.permute.xlu0 30
    %569 = vperm.xlu0 %568, %v36
    %v570 = vpop.permute.xlu0 %569
    %v572 = vlaneseq
    %v573 = vshrl.u32 %v572, 7
    %v574 = vsub.s32 3, %v573
    %v575 = vrot.slane %v514, %v574
    %v576 = vlaneseq
    %v577 = vshrl.u32 %v576, 7
    %v578 = vsub.s32 3, %v577
    %v579 = vrot.slane %v515, %v578
    %v580 = vmul.f32 %v570, %v575
    %v581 = vmul.f32 %v570, %v579
    %v582 = vadd.f32 %v566, %v580
    %v583 = vadd.f32 %v567, %v581
    %584 = vset.pattern.permute.xlu0 31
    %585 = vperm.xlu0 %584, %v36
    %v586 = vpop.permute.xlu0 %585
    %v588 = vlaneseq
    %v589 = vshrl.u32 %v588, 7
    %v590 = vsub.s32 4, %v589
    %v591 = vrot.slane %v514, %v590
    %v592 = vlaneseq
    %v593 = vshrl.u32 %v592, 7
    %v594 = vsub.s32 4, %v593
    %v595 = vrot.slane %v515, %v594
    %v596 = vmul.f32 %v586, %v591
    %v597 = vmul.f32 %v586, %v595
    %v598 = vadd.f32 %v582, %v596
    %v599 = vadd.f32 %v583, %v597
    %600 = vset.pattern.permute.xlu0 32
    %601 = vperm.xlu0 %600, %v36
    %v602 = vpop.permute.xlu0 %601
    %v604 = vlaneseq
    %v605 = vshrl.u32 %v604, 7
    %v606 = vsub.s32 5, %v605
    %v607 = vrot.slane %v514, %v606
    %v608 = vlaneseq
    %v609 = vshrl.u32 %v608, 7
    %v610 = vsub.s32 5, %v609
    %v611 = vrot.slane %v515, %v610
    %v612 = vmul.f32 %v602, %v607
    %v613 = vmul.f32 %v602, %v611
    %v614 = vadd.f32 %v598, %v612
    %v615 = vadd.f32 %v599, %v613
    %616 = vset.pattern.permute.xlu0 33
    %617 = vperm.xlu0 %616, %v36
    %v618 = vpop.permute.xlu0 %617
    %v620 = vlaneseq
    %v621 = vshrl.u32 %v620, 7
    %v622 = vsub.s32 6, %v621
    %v623 = vrot.slane %v514, %v622
    %v624 = vlaneseq
    %v625 = vshrl.u32 %v624, 7
    %v626 = vsub.s32 6, %v625
    %v627 = vrot.slane %v515, %v626
    %v628 = vmul.f32 %v618, %v623
    %v629 = vmul.f32 %v618, %v627
    %v630 = vadd.f32 %v614, %v628
    %v631 = vadd.f32 %v615, %v629
    %632 = vset.pattern.permute.xlu0 34
    %633 = vperm.xlu0 %632, %v36
    %v634 = vpop.permute.xlu0 %633
    %v636 = vlaneseq
    %v637 = vshrl.u32 %v636, 7
    %v638 = vsub.s32 7, %v637
    %v639 = vrot.slane %v514, %v638
    %v640 = vlaneseq
    %v641 = vshrl.u32 %v640, 7
    %v642 = vsub.s32 7, %v641
    %v643 = vrot.slane %v515, %v642
    %v644 = vmul.f32 %v634, %v639
    %v645 = vmul.f32 %v634, %v643
    %v646 = vadd.f32 %v630, %v644
    %v647 = vadd.f32 %v631, %v645
    %648 = vxpose.xlu0.b32.start [1/16] %v646, 128
    %649 = vxpose.xlu0.b32.cont [2/16] 0.0, 128
    %650 = vxpose.xlu0.b32.cont [3/16] 0.0, 128
    %651 = vxpose.xlu0.b32.cont [4/16] 0.0, 128
    %652 = vxpose.xlu0.b32.cont [5/16] 0.0, 128
    %653 = vxpose.xlu0.b32.cont [6/16] 0.0, 128
    %654 = vxpose.xlu0.b32.cont [7/16] 0.0, 128
    %655 = vxpose.xlu0.b32.cont [8/16] 0.0, 128
    %656 = vxpose.xlu0.b32.cont [9/16] 0.0, 128
    %657 = vxpose.xlu0.b32.cont [10/16] 0.0, 128
    %658 = vxpose.xlu0.b32.cont [11/16] 0.0, 128
    %659 = vxpose.xlu0.b32.cont [12/16] 0.0, 128
    %660 = vxpose.xlu0.b32.cont [13/16] 0.0, 128
    %661 = vxpose.xlu0.b32.cont [14/16] 0.0, 128
    %662 = vxpose.xlu0.b32.cont [15/16] 0.0, 128
    %663 = vxpose.xlu0.b32.end [16/16] 0.0, 128
    %v664 = vpop.trf.xlu0
    %v665 = vpop.trf.xlu0
    %v666 = vpop.trf.xlu0
    %v667 = vpop.trf.xlu0
    %v668 = vpop.trf.xlu0
    %v669 = vpop.trf.xlu0
    %v670 = vpop.trf.xlu0
    %v671 = vpop.trf.xlu0
    %v672 = vpop.trf.xlu0
    %v673 = vpop.trf.xlu0
    %v674 = vpop.trf.xlu0
    %v675 = vpop.trf.xlu0
    %v676 = vpop.trf.xlu0
    %v677 = vpop.trf.xlu0
    %v678 = vpop.trf.xlu0
    %v679 = vpop.trf.xlu0
    %680 = vxpose.xlu0.b32.start [1/16] %v647, 128
    %681 = vxpose.xlu0.b32.cont [2/16] 0.0, 128
    %682 = vxpose.xlu0.b32.cont [3/16] 0.0, 128
    %683 = vxpose.xlu0.b32.cont [4/16] 0.0, 128
    %684 = vxpose.xlu0.b32.cont [5/16] 0.0, 128
    %685 = vxpose.xlu0.b32.cont [6/16] 0.0, 128
    %686 = vxpose.xlu0.b32.cont [7/16] 0.0, 128
    %687 = vxpose.xlu0.b32.cont [8/16] 0.0, 128
    %688 = vxpose.xlu0.b32.cont [9/16] 0.0, 128
    %689 = vxpose.xlu0.b32.cont [10/16] 0.0, 128
    %690 = vxpose.xlu0.b32.cont [11/16] 0.0, 128
    %691 = vxpose.xlu0.b32.cont [12/16] 0.0, 128
    %692 = vxpose.xlu0.b32.cont [13/16] 0.0, 128
    %693 = vxpose.xlu0.b32.cont [14/16] 0.0, 128
    %694 = vxpose.xlu0.b32.cont [15/16] 0.0, 128
    %695 = vxpose.xlu0.b32.end [16/16] 0.0, 128
    %v696 = vpop.trf.xlu0
    %v697 = vpop.trf.xlu0
    %v698 = vpop.trf.xlu0
    %v699 = vpop.trf.xlu0
    %v700 = vpop.trf.xlu0
    %v701 = vpop.trf.xlu0
    %v702 = vpop.trf.xlu0
    %v703 = vpop.trf.xlu0
    %v704 = vpop.trf.xlu0
    %v705 = vpop.trf.xlu0
    %v706 = vpop.trf.xlu0
    %v707 = vpop.trf.xlu0
    %v708 = vpop.trf.xlu0
    %v709 = vpop.trf.xlu0
    %v710 = vpop.trf.xlu0
    %v711 = vpop.trf.xlu0
    %vm712 = vcmask 31744
    %713 = vst.msk [vmem:[%s2] sm:$0xff] %vm712, %v664
    %714 = vst.msk [vmem:[%s2 + $0x8] sm:$0xff] %vm712, %v665
    %715 = vst.msk [vmem:[%s2 + $0x10] sm:$0xff] %vm712, %v666
    %716 = vst.msk [vmem:[%s2 + $0x18] sm:$0xff] %vm712, %v667
    %717 = vst.msk [vmem:[%s2 + $0x20] sm:$0xff] %vm712, %v668
    %718 = vst.msk [vmem:[%s2 + $0x28] sm:$0xff] %vm712, %v669
    %719 = vst.msk [vmem:[%s2 + $0x30] sm:$0xff] %vm712, %v670
    %720 = vst.msk [vmem:[%s2 + $0x38] sm:$0xff] %vm712, %v671
    %721 = vst.msk [vmem:[%s2 + $0x40] sm:$0xff] %vm712, %v672
    %722 = vst.msk [vmem:[%s2 + $0x48] sm:$0xff] %vm712, %v673
    %723 = vst.msk [vmem:[%s2 + $0x50] sm:$0xff] %vm712, %v674
    %724 = vst.msk [vmem:[%s2 + $0x58] sm:$0xff] %vm712, %v675
    %725 = vst.msk [vmem:[%s2 + $0x60] sm:$0xff] %vm712, %v676
    %726 = vst.msk [vmem:[%s2 + $0x68] sm:$0xff] %vm712, %v677
    %727 = vst.msk [vmem:[%s2 + $0x70] sm:$0xff] %vm712, %v678
    %728 = vst.msk [vmem:[%s2 + $0x78] sm:$0xff] %vm712, %v679
    %729 = vst.msk [vmem:[%s2 + $0x80] sm:$0xff] %vm712, %v696
    %730 = vst.msk [vmem:[%s2 + $0x88] sm:$0xff] %vm712, %v697
    %731 = vst.msk [vmem:[%s2 + $0x90] sm:$0xff] %vm712, %v698
    %732 = vst.msk [vmem:[%s2 + $0x98] sm:$0xff] %vm712, %v699
    %733 = vst.msk [vmem:[%s2 + $0xa0] sm:$0xff] %vm712, %v700
    %734 = vst.msk [vmem:[%s2 + $0xa8] sm:$0xff] %vm712, %v701
    %735 = vst.msk [vmem:[%s2 + $0xb0] sm:$0xff] %vm712, %v702
    %736 = vst.msk [vmem:[%s2 + $0xb8] sm:$0xff] %vm712, %v703
    %737 = vst.msk [vmem:[%s2 + $0xc0] sm:$0xff] %vm712, %v704
    %738 = vst.msk [vmem:[%s2 + $0xc8] sm:$0xff] %vm712, %v705
    %739 = vst.msk [vmem:[%s2 + $0xd0] sm:$0xff] %vm712, %v706
    %740 = vst.msk [vmem:[%s2 + $0xd8] sm:$0xff] %vm712, %v707
    %vm741 = vcmask 24576
    %742 = vst.msk [vmem:[%s2 + $0xe0] sm:$0x1] %vm741, %v708
    // Predicated region
    $region18: #{dpb_forward.1} parent=1 // pred_check
      _
    $region19: #{dpb_forward.1} parent=1 // pred_check_branch
      %744 = sbr.rel (0) target = $region21
    $region20: #{dpb_forward.1} parent=1 // pred_region
      _
    $region21: #{dpb_forward.1} parent=1 // pred_fallthru
      _
    // Predicated region
    $region22: #{dpb_forward.1} parent=1 // pred_check
      _
    $region23: #{dpb_forward.1} parent=1 // pred_check_branch
      %746 = sbr.rel (0) target = $region25
    $region24: #{dpb_forward.1} parent=1 // pred_region
      _
    $region25: #{dpb_forward.1} parent=1 // pred_fallthru
      _
    %747 = vsyncpa [#allocation3], 1
    %748 = vsyncpa [#allocation5], 1

</llo_original>
